<compile_context>
chip_gen: v7x
topology: tpu7x:2x2x1
jax: 0.10.0
libtpu: 0.0.40
codegen_flags: <defaults>
</compile_context>

<pallas_src>
import functools

import jax
import jax.numpy as jnp
from jax.experimental import pallas as pl
from jax.experimental.pallas import tpu as pltpu


def _round_up(x, m):
    return ((x + m - 1) // m) * m


def _conv_kernel(x_ref, w_ref, b_ref, o_ref, *, K, stride, tile_h, Wp, Cp, n_tiles):
    """One (batch, row-tile) grid step: patch build + ONE fused MXU matmul + bias.

    x_ref: (1, Cp, Lpad)        reflection-padded image, rows flattened on the lane axis
    w_ref: (O, K*K*Cp)          weights, (kh, kw)-major / channel-minor (resident)
    b_ref: (O, 1)               f32 bias (resident)
    o_ref: (1, O, tile_h*Wp)    output slab, (out-row, padded-col) flattened on lanes
    """
    m = tile_h * Wp  # matmul columns (includes K-1 throwaway cols per row)

    if n_tiles == 1:
        base = 0  # fully static tap offsets (fast path used for small images)
    else:
        # The tile picker guarantees (tile_h*stride*Wp) % 128 == 0 when n_tiles > 1, so
        # the dynamic part of every tap offset is 128-aligned; the remainder is a small
        # static offset (kh*Wp + kw).
        base = pl.multiple_of(pl.program_id(1) * (tile_h * stride * Wp), 128)

    # Build the (K*K*Cp, m) patch operand: each (kh, kw) tap is a contiguous (strided
    # for stride > 1) lane window of the flattened image -- no per-tap reshape/relayout.
    taps = []
    for kh in range(K):
        for kw in range(K):
            start = base + kh * Wp + kw
            sl = pl.ds(start, m) if stride == 1 else pl.ds(start, m, stride)
            taps.append(x_ref[:, :, sl].reshape(Cp, m))
    patches = jnp.concatenate(taps, axis=0)  # (K*K*Cp, m), sublane-aligned concat

    # ONE output-oriented MXU matmul with contraction K*K*Cp, f32 accumulation,
    # f32 bias broadcast -- no transpose anywhere.
    acc = jnp.dot(w_ref[...], patches, preferred_element_type=jnp.float32)  # (O, m)
    o_ref[0] = (acc + b_ref[...]).astype(o_ref.dtype)


def _pick_tile_h(Ho, Wp, *, bytes_per_col, N, budget_bytes=4 << 20):
    """Largest row tile (divisor of Ho) whose flattened slab is lane-aligned
    ((tile_h*Wp) % 128 == 0) or covers the full extent, within a per-step VMEM budget
    for the m-proportional temporaries (guards accumulator pressure for large O)."""
    m_budget = max(Wp, budget_bytes // max(bytes_per_col, 1))
    divs = [d for d in range(1, Ho + 1) if Ho % d == 0]
    cand = [d for d in divs if d == Ho or (d * Wp) % 128 == 0]
    if N == 1:
        # v7x has 2 TensorCores: if N == 1, keep >= 2 grid steps when an aligned split
        # exists so both cores get work.
        split = [d for d in cand if d <= Ho // 2]
        if split:
            cand = split
    within = [d for d in cand if d * Wp <= m_budget]
    return max(within) if within else min(cand)


def _vmem_limit_bytes(need_bytes):
    try:
        cap = int(pltpu.get_tpu_info().vmem_capacity_bytes)  # 128 MiB v5e/v6e, 64 MiB v7x
    except Exception:
        cap = 64 << 20  # conservative fallback (v7x physical VMEM per TensorCore)
    return int(max(16 << 20, min(max(need_bytes, 32 << 20), int(0.85 * cap))))


def conv_layer_pallas(x_nchw, weight, bias, stride, *, compute_dtype=jnp.bfloat16):
    """ConvLayer.forward: ReflectionPad2d(K//2) followed by Conv2d(stride, dilation=1)."""
    N, C, H, W = x_nchw.shape
    O, Ci, K, Kw = weight.shape
    assert Ci == C and Kw == K
    assert stride >= 1
    p = K // 2
    assert p < H and p < W, "ReflectionPad2d requires kernel_size//2 < H and kernel_size//2 < W"

    Hp, Wp = H + 2 * p, W + 2 * p
    Ho = (Hp - K) // stride + 1
    Wo = (Wp - K) // stride + 1

    cd = jnp.dtype(compute_dtype).itemsize
    out_dtype = x_nchw.dtype
    od = jnp.dtype(out_dtype).itemsize
    sub = 32 // cd                 # min sublane tile: 8 (f32), 16 (bf16)
    Cp = _round_up(C, sub)         # channel pad -> aligned patch concat, dense vregs

    # Layout glue (small, fuses into ~one HBM pass; NO transpose -- kernel eats NCHW):
    # reflect-pad, cast, zero-pad channels, flatten (Hp, Wp) rows onto the lane axis and
    # add a small zero tail so the last tile's tap windows stay in bounds.
    # TODO(synk): fold the reflection + cast into the kernel (mirrored pl.ds / pltpu.roll
    # on the K//2 halo) to remove this wrapper pass entirely for very large images.
    x = jnp.pad(x_nchw, ((0, 0), (0, 0), (p, p), (p, p)), mode="reflect").astype(compute_dtype)
    x = jnp.pad(x, ((0, 0), (0, Cp - C), (0, 0), (0, 0)))
    L = Hp * Wp
    Lpad = _round_up(L + (stride - 1) * Wp + K, 128)
    x = jnp.pad(x.reshape(N, Cp, L), ((0, 0), (0, 0), (0, Lpad - L)))

    # Per-column VMEM cost of the m-proportional pieces (patch operand, f32 result,
    # double-buffered output block) -> budget-driven row tile.  Usually tile_h == Ho
    # (whole image per batch, fully static tap offsets, 1 grid step per batch).
    bytes_per_col = K * K * Cp * cd + _round_up(O, 8) * 4 + 2 * _round_up(O, 8) * od
    tile_h = _pick_tile_h(Ho, Wp, bytes_per_col=bytes_per_col, N=N)
    n_tiles = Ho // tile_h
    m = tile_h * Wp
    if n_tiles > 1:
        assert (tile_h * stride * Wp) % 128 == 0  # keeps dynamic tap offsets 128-aligned

    # PyTorch weight (O, C, kh, kw) -> (O, kh, kw, Cp) -> (O, K*K*Cp); matches the
    # (kh, kw)-major / channel-minor patch rows built in the kernel.  Padded channels
    # are zeros on both sides, so they contribute nothing.
    w4 = jnp.transpose(weight, (0, 2, 3, 1)).astype(compute_dtype)
    w4 = jnp.pad(w4, ((0, 0), (0, 0), (0, 0), (0, Cp - C)))
    w_mat = w4.reshape(O, K * K * Cp)
    b = bias.reshape(O, 1).astype(jnp.float32)

    # Generation-aware VMEM limit: double-buffered blocks + in-kernel temporaries.
    img_blk = Cp * Lpad * cd
    w_blk = _round_up(O, sub) * _round_up(K * K * Cp, 128) * cd
    b_blk = _round_up(O, 8) * 128 * 4
    out_blk = _round_up(O, 8) * _round_up(m, 128) * od
    tmp = (_round_up(K * K * Cp, sub) * _round_up(m, 128) * cd
           + _round_up(O, 8) * _round_up(m, 128) * 4)
    need = 2 * (img_blk + w_blk + b_blk + out_blk) + tmp + (8 << 20)
    vmem_limit = _vmem_limit_bytes(need)

    kernel = functools.partial(
        _conv_kernel, K=K, stride=stride, tile_h=tile_h, Wp=Wp, Cp=Cp, n_tiles=n_tiles)

    out = pl.pallas_call(
        kernel,
        out_shape=jax.ShapeDtypeStruct((N, O, Ho * Wp), out_dtype),
        grid_spec=pltpu.PrefetchScalarGridSpec(
            num_scalar_prefetch=0,
            grid=(N, n_tiles),
            in_specs=[
                # Whole flattened padded image resident per batch; re-DMA'd only when the
                # batch index changes.
                # TODO(synk): for very large Hp*Wp*C on v7x (64 MiB VMEM), switch to
                # memory_space=pl.ANY + manual halo DMA (or pipeline_mode=pl.Buffered(1))
                # so the resident image is not double-buffered.
                pl.BlockSpec((1, Cp, Lpad), lambda n, t: (n, 0, 0)),
                pl.BlockSpec((O, K * K * Cp), lambda n, t: (0, 0)),
                pl.BlockSpec((O, 1), lambda n, t: (0, 0)),
            ],
            out_specs=pl.BlockSpec((1, O, m), lambda n, t: (n, 0, t)),
        ),
        compiler_params=pltpu.CompilerParams(
            dimension_semantics=("parallel", "parallel"),
            vmem_limit_bytes=vmem_limit,
        ),
    )(x, w_mat, b)

    # Drop the K-1 throwaway columns per output row; metadata reshape to NCHW.
    # TODO(synk): tile O (third "arbitrary" grid axis + VMEM scratch accumulator) for
    # very large out_channels.
    return out.reshape(N, O, Ho, Wp)[:, :, :, :Wo]


def _reference(x_nchw, weight, bias, stride):
    p = weight.shape[-1] // 2
    x_pad = jnp.pad(x_nchw, ((0, 0), (0, 0), (p, p), (p, p)), mode="reflect")
    y = jax.lax.conv_general_dilated(
        x_pad, weight, window_strides=(stride, stride), padding="VALID",
        dimension_numbers=("NCHW", "OIHW", "NCHW"))
    return y + bias[None, :, None, None]


if __name__ == "__main__":
    # Module config: ConvLayer(in_channels=4, out_channels=8, kernel_size=3, stride=1)
    in_channels, out_channels, kernel_size, stride = 4, 8, 3, 1
    N, H, W = 2, 16, 16

    key = jax.random.PRNGKey(0)
    kx, kw, kb = jax.random.split(key, 3)
    x = jax.random.normal(kx, (N, in_channels, H, W), dtype=jnp.float32)
    weight = jax.random.normal(
        kw, (out_channels, in_channels, kernel_size, kernel_size), dtype=jnp.float32
    ) * 0.1
    bias = jax.random.normal(kb, (out_channels,), dtype=jnp.float32) * 0.1

    fwd = jax.jit(functools.partial(conv_layer_pallas, stride=stride))
    out = jax.block_until_ready(fwd(x, weight, bias))

    # Tight check against a reference that sees the same bf16-rounded operands
    # (the kernel multiplies in bf16 but accumulates and adds bias in f32).
    x_r = x.astype(jnp.bfloat16).astype(jnp.float32)
    w_r = weight.astype(jnp.bfloat16).astype(jnp.float32)
    ref_bf16 = _reference(x_r, w_r, bias, stride)
    assert out.shape == ref_bf16.shape == (N, out_channels, H, W)
    assert jnp.allclose(out, ref_bf16, atol=1e-4, rtol=1e-4)

    # Loose sanity check against the full-f32 reference (bf16 operand rounding only).
    ref_f32 = _reference(x, weight, bias, stride)
    assert jnp.allclose(out, ref_f32, atol=1e-1, rtol=1e-1)

    print("KERNEL_OK")
</pallas_src>

<mosaic_0001>
module attributes {stable_mosaic.version = 11 : i64} {
  func.func @_conv_kernel(%arg0: i32, %arg1: i32, %arg2: memref<1x16x384xbf16, #tpu.memory_space<vmem>>, %arg3: memref<8x144xbf16, #tpu.memory_space<vmem>>, %arg4: memref<8x1xf32, #tpu.memory_space<vmem>>, %arg5: memref<1x8x288xf32, #tpu.memory_space<vmem>>) attributes {dimension_semantics = [#tpu.dimension_semantics<parallel>, #tpu.dimension_semantics<parallel>], iteration_bounds = array<i64: 2, 1>, scalar_prefetch = 0 : i64, scratch_operands = 0 : i64, tpu.core_type = #tpu.core_type<tc>, window_params = [{transform_indices = @transform_0, window_bounds = array<i64: 1, 16, 384>}, {pipeline_mode = #tpu.pipeline_mode<synchronous>, transform_indices = @transform_1, window_bounds = array<i64: 8, 144>}, {pipeline_mode = #tpu.pipeline_mode<synchronous>, transform_indices = @transform_2, window_bounds = array<i64: 8, 1>}, {transform_indices = @transform_3, window_bounds = array<i64: 1, 8, 288>}]} {
    %c0 = arith.constant 0 : index
    %c0_0 = arith.constant 0 : index
    %c0_1 = arith.constant 0 : index
    %0 = vector.load %arg2[%c0, %c0_0, %c0_1] : memref<1x16x384xbf16, #tpu.memory_space<vmem>>, vector<1x16x288xbf16>
    %1 = vector.shape_cast %0 : vector<1x16x288xbf16> to vector<16x288xbf16>
    %c0_2 = arith.constant 0 : index
    %c0_3 = arith.constant 0 : index
    %c1 = arith.constant 1 : index
    %2 = vector.load %arg2[%c0_2, %c0_3, %c1] : memref<1x16x384xbf16, #tpu.memory_space<vmem>>, vector<1x16x288xbf16>
    %3 = vector.shape_cast %2 : vector<1x16x288xbf16> to vector<16x288xbf16>
    %c0_4 = arith.constant 0 : index
    %c0_5 = arith.constant 0 : index
    %c2 = arith.constant 2 : index
    %4 = vector.load %arg2[%c0_4, %c0_5, %c2] : memref<1x16x384xbf16, #tpu.memory_space<vmem>>, vector<1x16x288xbf16>
    %5 = vector.shape_cast %4 : vector<1x16x288xbf16> to vector<16x288xbf16>
    %c0_6 = arith.constant 0 : index
    %c0_7 = arith.constant 0 : index
    %c18 = arith.constant 18 : index
    %6 = vector.load %arg2[%c0_6, %c0_7, %c18] : memref<1x16x384xbf16, #tpu.memory_space<vmem>>, vector<1x16x288xbf16>
    %7 = vector.shape_cast %6 : vector<1x16x288xbf16> to vector<16x288xbf16>
    %c0_8 = arith.constant 0 : index
    %c0_9 = arith.constant 0 : index
    %c19 = arith.constant 19 : index
    %8 = vector.load %arg2[%c0_8, %c0_9, %c19] : memref<1x16x384xbf16, #tpu.memory_space<vmem>>, vector<1x16x288xbf16>
    %9 = vector.shape_cast %8 : vector<1x16x288xbf16> to vector<16x288xbf16>
    %c0_10 = arith.constant 0 : index
    %c0_11 = arith.constant 0 : index
    %c20 = arith.constant 20 : index
    %10 = vector.load %arg2[%c0_10, %c0_11, %c20] : memref<1x16x384xbf16, #tpu.memory_space<vmem>>, vector<1x16x288xbf16>
    %11 = vector.shape_cast %10 : vector<1x16x288xbf16> to vector<16x288xbf16>
    %c0_12 = arith.constant 0 : index
    %c0_13 = arith.constant 0 : index
    %c36 = arith.constant 36 : index
    %12 = vector.load %arg2[%c0_12, %c0_13, %c36] : memref<1x16x384xbf16, #tpu.memory_space<vmem>>, vector<1x16x288xbf16>
    %13 = vector.shape_cast %12 : vector<1x16x288xbf16> to vector<16x288xbf16>
    %c0_14 = arith.constant 0 : index
    %c0_15 = arith.constant 0 : index
    %c37 = arith.constant 37 : index
    %14 = vector.load %arg2[%c0_14, %c0_15, %c37] : memref<1x16x384xbf16, #tpu.memory_space<vmem>>, vector<1x16x288xbf16>
    %15 = vector.shape_cast %14 : vector<1x16x288xbf16> to vector<16x288xbf16>
    %c0_16 = arith.constant 0 : index
    %c0_17 = arith.constant 0 : index
    %c38 = arith.constant 38 : index
    %16 = vector.load %arg2[%c0_16, %c0_17, %c38] : memref<1x16x384xbf16, #tpu.memory_space<vmem>>, vector<1x16x288xbf16>
    %17 = vector.shape_cast %16 : vector<1x16x288xbf16> to vector<16x288xbf16>
    %18 = tpu.concatenate %1, %3, %5, %7, %9, %11, %13, %15, %17 in 0 : vector<16x288xbf16>, vector<16x288xbf16>, vector<16x288xbf16>, vector<16x288xbf16>, vector<16x288xbf16>, vector<16x288xbf16>, vector<16x288xbf16>, vector<16x288xbf16>, vector<16x288xbf16> -> vector<144x288xbf16>
    %c0_18 = arith.constant 0 : index
    %c0_19 = arith.constant 0 : index
    %19 = vector.load %arg3[%c0_18, %c0_19] : memref<8x144xbf16, #tpu.memory_space<vmem>>, vector<8x144xbf16>
    %cst = arith.constant dense<0.000000e+00> : vector<8x288xf32>
    %20 = tpu.matmul %19, %18, %cst {dimension_numbers = #tpu.dot_dimension_numbers<[1], [0], [0], [1], [0, 0, 1, 1], [], []>} : vector<8x144xbf16>, vector<144x288xbf16>, vector<8x288xf32> -> vector<8x288xf32>
    %c0_20 = arith.constant 0 : index
    %c0_21 = arith.constant 0 : index
    %21 = vector.load %arg4[%c0_20, %c0_21] : memref<8x1xf32, #tpu.memory_space<vmem>>, vector<8x1xf32>
    %22 = vector.broadcast %21 : vector<8x1xf32> to vector<8x288xf32>
    %23 = arith.addf %20, %22 : vector<8x288xf32>
    %c0_22 = arith.constant 0 : index
    %c0_23 = arith.constant 0 : index
    %c0_24 = arith.constant 0 : index
    %24 = vector.load %arg5[%c0_22, %c0_23, %c0_24] : memref<1x8x288xf32, #tpu.memory_space<vmem>>, vector<1x8x288xf32>
    %25 = vector.shape_cast %24 : vector<1x8x288xf32> to vector<8x288xf32>
    %26 = vector.shape_cast %23 : vector<8x288xf32> to vector<1x8x288xf32>
    tpu.vector_store %arg5[%c0_22, %c0_23, %c0_24], %26 {strides = array<i32>} : memref<1x8x288xf32, #tpu.memory_space<vmem>>, vector<1x8x288xf32>,
    return
  }
  func.func @transform_0(%arg0: i32, %arg1: i32) -> (i32, i32, i32) {
    %c0_i32 = arith.constant 0 : i32
    %c0_i32_0 = arith.constant 0 : i32
    %c0_i32_1 = arith.constant 0 : i32
    return %arg0, %c0_i32, %c0_i32_0 : i32, i32, i32
  }
  func.func @transform_1(%arg0: i32, %arg1: i32) -> (i32, i32) {
    %c0_i32 = arith.constant 0 : i32
    %c0_i32_0 = arith.constant 0 : i32
    %c0_i32_1 = arith.constant 0 : i32
    return %c0_i32, %c0_i32_0 : i32, i32
  }
  func.func @transform_2(%arg0: i32, %arg1: i32) -> (i32, i32) {
    %c0_i32 = arith.constant 0 : i32
    %c0_i32_0 = arith.constant 0 : i32
    %c0_i32_1 = arith.constant 0 : i32
    return %c0_i32, %c0_i32_0 : i32, i32
  }
  func.func @transform_3(%arg0: i32, %arg1: i32) -> (i32, i32, i32) {
    %c0_i32 = arith.constant 0 : i32
    %c0_i32_0 = arith.constant 0 : i32
    return %arg0, %c0_i32, %arg1 : i32, i32, i32
  }
}

</mosaic_0001>

<llo_original>
// kernel: conv_layer_pallas.1
$region0: #{conv_layer_pallas.1}
  #allocation0 [shape = 'u32[]', space=smem, size = 0x4, offset = 0x4, fixed_abs, tag = 'smem constant byte address 0x4 - core index']
  #allocation1 [shape = 'u32[144,128]{1,0:T(1,128)}', space=vmem, size = 0x12000, scoped, tag = 'internal scratch']
  %s0 = inlined_call_operand.vmem [shape: bf16[2,16,384], index: 0, kind: input, shape index: {}]
  %s1 = inlined_call_operand.vmem [shape: bf16[8,144], index: 1, kind: input, shape index: {}]
  %s2 = inlined_call_operand.vmem [shape: f32[8,1], index: 2, kind: input, shape index: {}]
  %s3 = inlined_call_operand.vmem [shape: f32[2,8,288], index: 3, kind: output, shape index: {}]
  %s4 = sld [smem:[#allocation0]]
  $region45: #{conv_layer_pallas.1} parent=0
    _
  %s6 = ssub.s32 1, %s4
  %s7 = scalar_select 0, %s6, %s4
  loop: start=0, step=1, limit=4
  $region2: #{conv_layer_pallas.1} parent=0 // loop_pre_header
    _
  $region3: #{conv_layer_pallas.1} parent=0 // loop_header
    %s9 = sphi 0, %s13
    %p10 = scmp.ge.s32.totalorder %s9, 4
    %s16 = sphi 0, %s28
    %s17 = sphi 0, %s24
    %s18 = sphi 0, %s16
    %s19 = sphi 0, %s17
    %s20 = sphi 0, %s18
    %s21 = sphi 0, %s19
    %s31 = sphi 0, %s33
    %s34 = sphi 0, %s31
    %s35 = sphi 0, %s34
    %s51 = sphi 0, %s35
    %s55 = sphi 0, %s55
    %s57 = sphi 0, %s55
    %s58 = sphi 0, %s57
    %s72 = sphi 0, %s58
    %s76 = sphi 0, %s76
    %s78 = sphi 0, %s76
    %s79 = sphi 0, %s78
    %s93 = sphi 0, %s79
    %s101 = sphi 0, %s103
    %s104 = sphi 0, %s101
    %s105 = sphi 0, %s104
    %s121 = sphi 0, %s105
  $region4: #{conv_layer_pallas.1} parent=0 // loop_header_branch
    %12 = sbr.rel (%p10) target = $region8
  $region5: #{conv_layer_pallas.1} parent=0 // loop_body
    %s14 = ssub.s32 %s9, 1
    %s15 = ssub.s32 %s9, 2
    %s22 = sadd.s32 1, %s17
    %p23 = scmp.ge.s32.totalorder %s22, 1
    %s24 = scalar_select %p23, 0, %s22
    %s25 = sadd.s32 1, %s16
    %s26 = scalar_select %p23, %s25, %s16
    %p27 = scmp.ge.s32.totalorder %s26, 2
    %s28 = scalar_select %p27, 0, %s26
    %s29 = ssub.s32 %s16, %s28
    %p30 = scmp.eq.s32.totalorder %s29, 0
    %s32 = sadd.s32 %s31, 1
    %s33 = scalar_select %p30, %s31, %s32
    %p36 = pneg %p30
    %p37 = scmp.eq.s32.totalorder %s9, 1
    %p38 = por %p36, %p37
    %p39 = scmp.ne.s32.totalorder %s31, %s34
    %p40 = scmp.eq.s32.totalorder %s9, 0
    %p41 = por %p39, %p40
    %p42 = scmp.ne.s32.totalorder %s31, %s34
    %p43 = scmp.eq.s32.totalorder %s14, 1
    %p44 = por %p42, %p43
    %p45 = scmp.ne.s32.totalorder %s34, %s35
    %p46 = scmp.eq.s32.totalorder %s14, 0
    %p47 = por %p45, %p46
    %p48 = scmp.ne.s32.totalorder %s34, %s35
    %p49 = scmp.eq.s32.totalorder %s15, 1
    %p50 = por %p48, %p49
    %p52 = scmp.ne.s32.totalorder %s35, %s51
    %p53 = scmp.eq.s32.totalorder %s15, 0
    %p54 = por %p52, %p53
    %s56 = sadd.s32 %s55, 1
    %p59 = scmp.eq.s32.totalorder %s9, 1
    %p60 = scmp.ne.s32.totalorder %s55, %s57
    %p61 = scmp.eq.s32.totalorder %s9, 0
    %p62 = por %p60, %p61
    %p63 = scmp.ne.s32.totalorder %s55, %s57
    %p64 = scmp.eq.s32.totalorder %s14, 1
    %p65 = por %p63, %p64
    %p66 = scmp.ne.s32.totalorder %s57, %s58
    %p67 = scmp.eq.s32.totalorder %s14, 0
    %p68 = por %p66, %p67
    %p69 = scmp.ne.s32.totalorder %s57, %s58
    %p70 = scmp.eq.s32.totalorder %s15, 1
    %p71 = por %p69, %p70
    %p73 = scmp.ne.s32.totalorder %s58, %s72
    %p74 = scmp.eq.s32.totalorder %s15, 0
    %p75 = por %p73, %p74
    %s77 = sadd.s32 %s76, 1
    %p80 = scmp.eq.s32.totalorder %s9, 1
    %p81 = scmp.ne.s32.totalorder %s76, %s78
    %p82 = scmp.eq.s32.totalorder %s9, 0
    %p83 = por %p81, %p82
    %p84 = scmp.ne.s32.totalorder %s76, %s78
    %p85 = scmp.eq.s32.totalorder %s14, 1
    %p86 = por %p84, %p85
    %p87 = scmp.ne.s32.totalorder %s78, %s79
    %p88 = scmp.eq.s32.totalorder %s14, 0
    %p89 = por %p87, %p88
    %p90 = scmp.ne.s32.totalorder %s78, %s79
    %p91 = scmp.eq.s32.totalorder %s15, 1
    %p92 = por %p90, %p91
    %p94 = scmp.ne.s32.totalorder %s79, %s93
    %p95 = scmp.eq.s32.totalorder %s15, 0
    %p96 = por %p94, %p95
    %s97 = ssub.s32 %s16, %s28
    %s98 = ssub.s32 %s17, %s24
    %s99 = sor.u32 %s97, %s98
    %p100 = scmp.eq.s32.totalorder %s99, 0
    %s102 = sadd.s32 %s101, 1
    %s103 = scalar_select %p100, %s101, %s102
    %p106 = pneg %p100
    %p107 = scmp.eq.s32.totalorder %s9, 1
    %p108 = por %p106, %p107
    %p109 = scmp.ne.s32.totalorder %s101, %s104
    %p110 = scmp.eq.s32.totalorder %s9, 0
    %p111 = por %p109, %p110
    %p112 = scmp.ne.s32.totalorder %s101, %s104
    %p113 = scmp.eq.s32.totalorder %s14, 1
    %p114 = por %p112, %p113
    %p115 = scmp.ne.s32.totalorder %s104, %s105
    %p116 = scmp.eq.s32.totalorder %s14, 0
    %p117 = por %p115, %p116
    %p118 = scmp.ne.s32.totalorder %s104, %s105
    %p119 = scmp.eq.s32.totalorder %s15, 1
    %p120 = por %p118, %p119
    %p122 = scmp.ne.s32.totalorder %s105, %s121
    %p123 = scmp.eq.s32.totalorder %s15, 0
    %p124 = por %p122, %p123
    %p125 = scmp.le.s32.totalorder 1, %s9
    %p126 = scmp.lt.s32.totalorder %s9, 3
    %p127 = pnand %p125, %p126
    %p128 = pneg %p127
    // Predicated region
    $region9: #{conv_layer_pallas.1} parent=5 // pred_check
      _
    $region10: #{conv_layer_pallas.1} parent=5 // pred_check_branch
      %130 = sbr.rel (%p127) target = $region12
    $region11: #{conv_layer_pallas.1} parent=5 // pred_region
      %s131 = ssub.s32 %s9, 1
      // Predicated region
      $region13: #{conv_layer_pallas.1} parent=11 // pred_check
        %p132 = pneg %p68
      $region14: #{conv_layer_pallas.1} parent=11 // pred_check_branch
        %134 = sbr.rel (%p132) target = $region16
      $region15: #{conv_layer_pallas.1} parent=11 // pred_region
        _
      $region16: #{conv_layer_pallas.1} parent=11 // pred_fallthru
        _
      // Predicated region
      $region17: #{conv_layer_pallas.1} parent=11 // pred_check
        %p135 = pneg %p89
      $region18: #{conv_layer_pallas.1} parent=11 // pred_check_branch
        %137 = sbr.rel (%p135) target = $region20
      $region19: #{conv_layer_pallas.1} parent=11 // pred_region
        _
      $region20: #{conv_layer_pallas.1} parent=11 // pred_fallthru
        _
    $region12: #{conv_layer_pallas.1} parent=5 // pred_fallthru
      _
    %p138 = scmp.lt.s32.totalorder %s9, 2
    // Predicated region
    $region21: #{conv_layer_pallas.1} parent=5 // pred_check
      %p139 = pneg %p138
    $region22: #{conv_layer_pallas.1} parent=5 // pred_check_branch
      %141 = sbr.rel (%p139) target = $region24
    $region23: #{conv_layer_pallas.1} parent=5 // pred_region
      // Predicated region
      $region25: #{conv_layer_pallas.1} parent=23 // pred_check
        %p142 = pneg %p41
      $region26: #{conv_layer_pallas.1} parent=23 // pred_check_branch
        %144 = sbr.rel (%p142) target = $region28
      $region27: #{conv_layer_pallas.1} parent=23 // pred_region
        %p145 = scmp.lt.s32.totalorder %s16, 1
        %s146 = scalar_select %p145, %s16, 1
        %s147 = smul.addr %s146, 6
        %s148 = smul.addr %s147, 4
        %s149 = scalar_lea.vmem %s0, %s148
      $region28: #{conv_layer_pallas.1} parent=23 // pred_fallthru
        _
    $region24: #{conv_layer_pallas.1} parent=5 // pred_fallthru
      _
    %p150 = scmp.le.s32.totalorder 1, %s9
    %p151 = scmp.lt.s32.totalorder %s9, 3
    %p152 = pnand %p150, %p151
    %p153 = pneg %p152
    // Predicated region
    $region29: #{conv_layer_pallas.1} parent=5 // pred_check
      _
    $region30: #{conv_layer_pallas.1} parent=5 // pred_check_branch
      %155 = sbr.rel (%p152) target = $region32
    $region31: #{conv_layer_pallas.1} parent=5 // pred_region
      %s156 = ssub.s32 %s9, 1
      %p157 = scmp.lt.s32.totalorder %s18, 1
      %s158 = scalar_select %p157, %s18, 1
      %s159 = smul.addr %s158, 6
      %s160 = smul.addr %s159, 4
      %s161 = scalar_lea.vmem %s0, %s160
      %p162 = pneg %p47
      %p163 = pneg %p44
      %p164 = pneg %p68
      %p165 = pneg %p65
      %p166 = pneg %p89
      %p167 = pneg %p86
      %p168 = pneg %p117
      %p169 = pneg %p114
      %s170 = smul.u32 3, %s19
      %p171 = scmp.lt.s32.totalorder %s18, 1
      %s172 = scalar_select %p171, %s18, 1
      %p173 = scmp.lt.s32.totalorder %s170, 2
      %s174 = scalar_select %p173, %s170, 2
      %s175 = smul.addr %s172, 3
      %s176 = sadd.s32 %s174, %s175
      %s177 = smul.addr %s176, 8
      %s178 = scalar_lea.vmem %s3, %s177
      %p179 = scmp.lt.s32.totalorder %s18, 1
      %s180 = scalar_select %p179, %s18, 1
      %s181 = smul.addr %s180, 6
      %s182 = smul.addr %s181, 4
      %s183 = scalar_lea.vmem %s0, %s182
      %s184 = smul.u32 3, %s19
      %p185 = scmp.lt.s32.totalorder %s18, 1
      %s186 = scalar_select %p185, %s18, 1
      %p187 = scmp.lt.s32.totalorder %s184, 2
      %s188 = scalar_select %p187, %s184, 2
      %s189 = smul.addr %s186, 3
      %s190 = sadd.s32 %s188, %s189
      %s191 = smul.addr %s190, 8
      %s192 = scalar_lea.vmem %s3, %s191
      %s193 = smul.u32 3, %s19
      %v195 = vld [vmem:[%s183] sm:$0xff]
      %v196 = vld [vmem:[%s183 + $0x8] sm:$0xf]
      %v197 = vld [vmem:[%s183 + $0xc] sm:$0xff]
      %v198 = vld [vmem:[%s183 + $0x14] sm:$0xf]
      %v203 = vunpack.c.l.b16 %v195
      %v204 = vunpack.c.h.b16 %v195
      %v205 = vunpack.c.l.b16 %v196
      %v206 = vunpack.c.l.b16 %v197
      %v207 = vunpack.c.h.b16 %v197
      %v208 = vunpack.c.l.b16 %v198
      %v209 = vpack.c.b16 %v206, %v203
      %v210 = vpack.c.b16 %v207, %v204
      %v211 = vpack.c.b16 %v208, %v205
      %215 = vrot.lane.b32.xlu0 %v209, 127
      %v216 = vpop.permute.xlu0 %215
      %217 = vrot.lane.b32.xlu0 %v210, 127
      %v218 = vpop.permute.xlu0 %217
      %219 = vrot.lane.b32.xlu0 %v211, 127
      %v220 = vpop.permute.xlu0 %219
      %vm221 = vcmask 1039360
      %v222 = vsel %vm221, %v216, %v218
      %v223 = vsel %vm221, %v218, %v220
      %227 = vrot.lane.b32.xlu0 %v209, 126
      %v228 = vpop.permute.xlu0 %227
      %229 = vrot.lane.b32.xlu0 %v210, 126
      %v230 = vpop.permute.xlu0 %229
      %231 = vrot.lane.b32.xlu0 %v211, 126
      %v232 = vpop.permute.xlu0 %231
      %vm233 = vcmask 1031168
      %v234 = vsel %vm233, %v228, %v230
      %v235 = vsel %vm233, %v230, %v232
      %239 = vrot.lane.b32.xlu0 %v209, 110
      %v240 = vpop.permute.xlu0 %239
      %241 = vrot.lane.b32.xlu0 %v210, 110
      %v242 = vpop.permute.xlu0 %241
      %243 = vrot.lane.b32.xlu0 %v211, 110
      %v244 = vpop.permute.xlu0 %243
      %vm245 = vcmask 900096
      %v246 = vsel %vm245, %v240, %v242
      %v247 = vsel %vm245, %v242, %v244
      %251 = vrot.lane.b32.xlu0 %v209, 109
      %v252 = vpop.permute.xlu0 %251
      %253 = vrot.lane.b32.xlu0 %v210, 109
      %v254 = vpop.permute.xlu0 %253
      %255 = vrot.lane.b32.xlu0 %v211, 109
      %v256 = vpop.permute.xlu0 %255
      %vm257 = vcmask 891904
      %v258 = vsel %vm257, %v252, %v254
      %v259 = vsel %vm257, %v254, %v256
      %263 = vrot.lane.b32.xlu0 %v209, 108
      %v264 = vpop.permute.xlu0 %263
      %265 = vrot.lane.b32.xlu0 %v210, 108
      %v266 = vpop.permute.xlu0 %265
      %267 = vrot.lane.b32.xlu0 %v211, 108
      %v268 = vpop.permute.xlu0 %267
      %vm269 = vcmask 883712
      %v270 = vsel %vm269, %v264, %v266
      %v271 = vsel %vm269, %v266, %v268
      %275 = vrot.lane.b32.xlu0 %v209, 92
      %v276 = vpop.permute.xlu0 %275
      %277 = vrot.lane.b32.xlu0 %v210, 92
      %v278 = vpop.permute.xlu0 %277
      %279 = vrot.lane.b32.xlu0 %v211, 92
      %v280 = vpop.permute.xlu0 %279
      %vm281 = vcmask 752640
      %v282 = vsel %vm281, %v276, %v278
      %v283 = vsel %vm281, %v278, %v280
      %287 = vrot.lane.b32.xlu0 %v209, 91
      %v288 = vpop.permute.xlu0 %287
      %289 = vrot.lane.b32.xlu0 %v210, 91
      %v290 = vpop.permute.xlu0 %289
      %291 = vrot.lane.b32.xlu0 %v211, 91
      %v292 = vpop.permute.xlu0 %291
      %vm293 = vcmask 744448
      %v294 = vsel %vm293, %v288, %v290
      %v295 = vsel %vm293, %v290, %v292
      %299 = vrot.lane.b32.xlu0 %v209, 90
      %v300 = vpop.permute.xlu0 %299
      %301 = vrot.lane.b32.xlu0 %v210, 90
      %v302 = vpop.permute.xlu0 %301
      %303 = vrot.lane.b32.xlu0 %v211, 90
      %v304 = vpop.permute.xlu0 %303
      %vm305 = vcmask 736256
      %v306 = vsel %vm305, %v300, %v302
      %v307 = vsel %vm305, %v302, %v304
      %v311 = vld [vmem:[%s1] sm:$0xff]
      %v312 = vld [vmem:[%s2] sm:$0xff]
      %314 = vset.pattern.permute.xlu0 0
      %315 = vperm.xlu0 %314, %v312
      %v316 = vpop.permute.xlu0 %315
      %v319 = vunpack.c.l.b16 %v311
      %v320 = vunpack.c.h.b16 %v311
      %v321 = vpack.c.b16 %v319, %v319
      %v322 = vpack.c.b16 %v320, %v320
      %vm324 = vcmask 130048
      %v326 = vsel %vm324, %v322, 0
      %328 = vmatprep.subr.bf16.mxu0 %v210
      %329 = vmatpush1.bf16.msra.mxu0 %v209
      %330 = vmatprep.subr.bf16.mxu0 %v223
      %331 = vmatpush1.bf16.msra.mxu0 %v222
      %332 = vmatprep.subr.bf16.mxu0 %v235
      %333 = vmatpush1.bf16.msra.mxu0 %v234
      %334 = vmatprep.subr.bf16.mxu0 %v247
      %335 = vmatpush1.bf16.msra.mxu0 %v246
      %336 = vmatprep.subr.bf16.mxu0 %v259
      %337 = vmatpush1.bf16.msra.mxu0 %v258
      %338 = vmatprep.subr.bf16.mxu0 %v271
      %339 = vmatpush1.bf16.msra.mxu0 %v270
      %340 = vmatprep.subr.bf16.mxu0 %v283
      %341 = vmatpush1.bf16.msra.mxu0 %v282
      %342 = vmatprep.subr.bf16.mxu0 %v295
      %343 = vmatpush1.bf16.msra.mxu0 %v294
      %344 = vmatprep.subr.bf16.mxu0 %v307
      %345 = vmatpush1.bf16.msra.mxu0 %v306
      %346 = vmatprep.subr.bf16.mxu0 0
      %347 = vmatpush1.bf16.msra.mxu0 0
      %348 = vmatprep.subr.bf16.mxu0 0
      %349 = vmatpush1.bf16.msra.mxu0 0
      %350 = vmatprep.subr.bf16.mxu0 0
      %351 = vmatpush1.bf16.msra.mxu0 0
      %352 = vmatprep.subr.bf16.mxu0 0
      %353 = vmatpush1.bf16.msra.mxu0 0
      %354 = vmatprep.subr.bf16.mxu0 0
      %355 = vmatpush1.bf16.msra.mxu0 0
      %356 = vmatprep.subr.bf16.mxu0 0
      %357 = vmatpush1.bf16.msra.mxu0 0
      %358 = vmatprep.subr.bf16.mxu0 0
      %359 = vmatpush1.bf16.msra.mxu0 0
      %360 = vmatprep.mubr.bf16.mxu0 %v326
      %361 = vmatmul.mubr.bf16.gmra.mrb[0].mxu0 %v321
      %v362 = vpop.f32.mrb[0].mxu0
      %v363 = vadd.f32 %v316, %v362
      %v364 = vpop.f32.mrb[0].mxu0
      %v365 = vadd.f32 %v316, %v364
      %v366 = vpop.f32.mrb[0].mxu0
      %v367 = vpop.f32.mrb[0].mxu0
      %368 = vdwg.mxu0
      %369 = vmatprep.subr.bf16.mxu0 0
      %370 = vmatpush1.bf16.msra.mxu0 %v211
      %371 = vmatprep.subr.bf16.mxu0 0
      %372 = vmatpush1.bf16.msra.mxu0 %v220
      %373 = vmatprep.subr.bf16.mxu0 0
      %374 = vmatpush1.bf16.msra.mxu0 %v232
      %375 = vmatprep.subr.bf16.mxu0 0
      %376 = vmatpush1.bf16.msra.mxu0 %v244
      %377 = vmatprep.subr.bf16.mxu0 0
      %378 = vmatpush1.bf16.msra.mxu0 %v256
      %379 = vmatprep.subr.bf16.mxu0 0
      %380 = vmatpush1.bf16.msra.mxu0 %v268
      %381 = vmatprep.subr.bf16.mxu0 0
      %382 = vmatpush1.bf16.msra.mxu0 %v280
      %383 = vmatprep.subr.bf16.mxu0 0
      %384 = vmatpush1.bf16.msra.mxu0 %v292
      %385 = vmatprep.subr.bf16.mxu0 0
      %386 = vmatpush1.bf16.msra.mxu0 %v304
      %387 = vmatprep.subr.bf16.mxu0 0
      %388 = vmatpush1.bf16.msra.mxu0 0
      %389 = vmatprep.subr.bf16.mxu0 0
      %390 = vmatpush1.bf16.msra.mxu0 0
      %391 = vmatprep.subr.bf16.mxu0 0
      %392 = vmatpush1.bf16.msra.mxu0 0
      %393 = vmatprep.subr.bf16.mxu0 0
      %394 = vmatpush1.bf16.msra.mxu0 0
      %395 = vmatprep.subr.bf16.mxu0 0
      %396 = vmatpush1.bf16.msra.mxu0 0
      %397 = vmatprep.subr.bf16.mxu0 0
      %398 = vmatpush1.bf16.msra.mxu0 0
      %399 = vmatprep.subr.bf16.mxu0 0
      %400 = vmatpush1.bf16.msra.mxu0 0
      %401 = vmatprep.mubr.bf16.mxu0 %v326
      %402 = vmatmul.mubr.bf16.gmra.mrb[0].mxu0 %v321
      %v403 = vpop.f32.mrb[0].mxu0
      %v404 = vadd.f32 %v316, %v403
      %v405 = vpop.f32.mrb[0].mxu0
      %v406 = vpop.f32.mrb[0].mxu0
      %v407 = vpop.f32.mrb[0].mxu0
      %408 = vdwg.mxu0
      %409 = vst [vmem:[%s192] sm:$0xff] %v363
      %410 = vst [vmem:[%s192 + $0x8] sm:$0xff] %v365
      %vm411 = vcmask 261120
      %412 = vst.msk [vmem:[%s192 + $0x10] sm:$0xff] %vm411, %v404
      %s413 = smul.u32 3, %s19
      %p414 = scmp.lt.s32.totalorder %s18, 1
      %s415 = scalar_select %p414, %s18, 1
      %p416 = scmp.lt.s32.totalorder %s413, 2
      %s417 = scalar_select %p416, %s413, 2
      %s418 = smul.addr %s415, 3
      %s419 = sadd.s32 %s417, %s418
      %s420 = smul.addr %s419, 8
      %s421 = scalar_lea.vmem %s3, %s420
      // Predicated region
      $region33: #{conv_layer_pallas.1} parent=31 // pred_check
        %p422 = pneg %p114
      $region34: #{conv_layer_pallas.1} parent=31 // pred_check_branch
        %424 = sbr.rel (%p422) target = $region36
      $region35: #{conv_layer_pallas.1} parent=31 // pred_region
        %s425 = smul.u32 3, %s19
      $region36: #{conv_layer_pallas.1} parent=31 // pred_fallthru
        _
    $region32: #{conv_layer_pallas.1} parent=5 // pred_fallthru
      _
    %p426 = scmp.le.s32.totalorder 2, %s9
    // Predicated region
    $region37: #{conv_layer_pallas.1} parent=5 // pred_check
      %p427 = pneg %p426
    $region38: #{conv_layer_pallas.1} parent=5 // pred_check_branch
      %429 = sbr.rel (%p427) target = $region40
    $region39: #{conv_layer_pallas.1} parent=5 // pred_region
      %s430 = ssub.s32 %s9, 2
      // Predicated region
      $region41: #{conv_layer_pallas.1} parent=39 // pred_check
        %p431 = pneg %p120
      $region42: #{conv_layer_pallas.1} parent=39 // pred_check_branch
        %433 = sbr.rel (%p431) target = $region44
      $region43: #{conv_layer_pallas.1} parent=39 // pred_region
        %s434 = smul.u32 3, %s21
        %p435 = scmp.lt.s32.totalorder %s20, 1
        %s436 = scalar_select %p435, %s20, 1
        %p437 = scmp.lt.s32.totalorder %s434, 2
        %s438 = scalar_select %p437, %s434, 2
        %s439 = smul.addr %s436, 3
        %s440 = sadd.s32 %s438, %s439
        %s441 = smul.addr %s440, 8
        %s442 = scalar_lea.vmem %s3, %s441
      $region44: #{conv_layer_pallas.1} parent=39 // pred_fallthru
        _
    $region40: #{conv_layer_pallas.1} parent=5 // pred_fallthru
      _
  $region6: #{conv_layer_pallas.1} parent=0 // loop_footer
    %s13 = sadd.s32 1, %s9
  $region7: #{conv_layer_pallas.1} parent=0 // loop_footer_branch
    %8 = sbr.rel target = $region3
  $region8: #{conv_layer_pallas.1} parent=0 // loop_exit
    _

</llo_original>
